<compile_context>
chip_gen: v7x
topology: tpu7x:2x2x1
jax: 0.10.0
libtpu: 0.0.40
codegen_flags: <defaults>
</compile_context>

<pallas_src>
import functools

import jax
import jax.numpy as jnp
from jax.experimental import pallas as pl
from jax.experimental.pallas import tpu as pltpu

# ---------------------------------------------------------------------------
# Model hyper-parameters (small, consistent with the module's forward)
# ---------------------------------------------------------------------------
BATCH = 2
IN_CH = 4
IMG = 16
PATCH = 4
EMBED_DIM = 32
HP = IMG // PATCH             # 4
WP = IMG // PATCH             # 4
NUM_PATCHES = HP * WP         # 16
KDIM = IN_CH * PATCH * PATCH  # 64

# murmur3 fmix32 constants
_C_GOLD = 0x9E3779B9
_C_MIX1 = 0x85EBCA6B
_C_MIX2 = 0xC2B2AE35


# ---------------------------------------------------------------------------
# Fused kernel: patch-embed conv (as matmul) + bias + optional random mask
# ---------------------------------------------------------------------------
def _mae_fused_kernel(seed_ref, xt_ref, wt_ref, b_ref, h_ref, hm_ref,
                      *, keep_threshold, apply_mask, batch, embed_dim,
                      num_patches):
    """seed_ref: (1,) int32 in SMEM
       xt_ref  : (B, K, Np)  im2col patches, K-major (K = C*P*P)
       wt_ref  : (E, K)      conv weight (PyTorch (E,C,P,P) flattened)
       b_ref   : (E, 1)      conv bias
       h_ref   : (B, E, Np)  un-masked embedding (NCHW conv-output order)
       hm_ref  : (B, E, Np)  masked embedding
    """
    wt = wt_ref[...]
    bias = b_ref[...]
    if apply_mask:
        seed = seed_ref[0].astype(jnp.uint32)

    # batch is tiny and static -> unrolled; each iteration is one MXU matmul
    # and full-slab loads/stores (no lane-offset slicing anywhere).
    for b in range(batch):
        xb = xt_ref[b, :, :]                                   # (K, Np)
        acc = jnp.dot(wt, xb, preferred_element_type=jnp.float32)  # (E, Np)
        acc = acc + bias                                       # bias over lanes

        if apply_mask:
            # Counter-based PRNG: murmur3-style mix of (seed, flat position).
            # Pure jnp -> lowers on Mosaic and under interpret mode.
            # NOTE: if this kernel ever grows a grid, also mix
            # pl.program_id(...) into `seed` so tiles don't replay one mask.
            rows = jax.lax.broadcasted_iota(
                jnp.int32, acc.shape, 0).astype(jnp.uint32)
            cols = jax.lax.broadcasted_iota(
                jnp.int32, acc.shape, 1).astype(jnp.uint32)
            z = (rows + jnp.uint32(b * embed_dim)) * jnp.uint32(num_patches)
            z = z + cols
            z = z + (seed + jnp.uint32(1)) * jnp.uint32(_C_GOLD)
            z = (z ^ (z >> jnp.uint32(16))) * jnp.uint32(_C_MIX1)
            z = (z ^ (z >> jnp.uint32(13))) * jnp.uint32(_C_MIX2)
            z = z ^ (z >> jnp.uint32(16))
            # keep  <=>  uniform(0,1) > mask_ratio, as a signed-int threshold
            # compare on the low 31 hashed bits (no float-convert chain).
            r31 = (z & jnp.uint32(0x7FFFFFFF)).astype(jnp.int32)
            keep = (r31 > jnp.int32(keep_threshold)).astype(acc.dtype)
            masked = acc * keep
        else:
            masked = acc

        h_ref[b, :, :] = acc
        hm_ref[b, :, :] = masked


def _fused_patch_embed(x_colst, w_t, bias, seed_arr, *, mask_ratio, training):
    batch, kdim, npatch = x_colst.shape
    edim = w_t.shape[0]
    keep_threshold = min(int(float(mask_ratio) * (1 << 31)), (1 << 31) - 1)
    kernel = functools.partial(
        _mae_fused_kernel,
        keep_threshold=keep_threshold,
        apply_mask=bool(training) and float(mask_ratio) > 0.0,
        batch=batch, embed_dim=edim, num_patches=npatch)
    out_shape = (
        jax.ShapeDtypeStruct((batch, edim, npatch), jnp.float32),
        jax.ShapeDtypeStruct((batch, edim, npatch), jnp.float32),
    )
    return pl.pallas_call(
        kernel,
        out_shape=out_shape,
        in_specs=[
            pl.BlockSpec(memory_space=pltpu.SMEM),                 # seed
            pl.BlockSpec((batch, kdim, npatch), lambda: (0, 0, 0)),  # patches
            pl.BlockSpec((edim, kdim), lambda: (0, 0)),            # weight
            pl.BlockSpec((edim, 1), lambda: (0, 0)),               # bias
        ],
        out_specs=(
            pl.BlockSpec((batch, edim, npatch), lambda: (0, 0, 0)),
            pl.BlockSpec((batch, edim, npatch), lambda: (0, 0, 0)),
        ),
    )(seed_arr, x_colst, w_t, bias)


# ---------------------------------------------------------------------------
# MAEEncoder.forward
# ---------------------------------------------------------------------------
def mae_encoder_forward(x, params, mask_ratio=0.75, training=False, seed=0):
    """Returns (h_masked, h) matching the PyTorch module semantics."""
    if isinstance(x, list):
        x = x[0]
    B, C, H, W = x.shape
    P = PATCH
    Hp, Wp = H // P, W // P
    Np = Hp * Wp

    # im2col, laid out so the kernel's matmul directly produces NCHW-flatten
    # ordering:  x_colst[b, (c*P+p)*P+q, i*Wp+j] = x[b, c, i*P+p, j*P+q]
    # TODO(synk): fold this rank-6 rearrangement into the kernel (load raw x
    # as a VMEM block) once Mosaic relayout support for it is not a risk.
    xp = x.reshape(B, C, Hp, P, Wp, P)
    xp = jnp.transpose(xp, (0, 1, 3, 5, 2, 4))          # (B, C, P, P, Hp, Wp)
    x_colst = xp.reshape(B, C * P * P, Np)

    seed_arr = jnp.asarray(seed, dtype=jnp.int32).reshape(1)
    h3, hm3 = _fused_patch_embed(x_colst, params["wT"], params["b"], seed_arr,
                                 mask_ratio=mask_ratio, training=training)
    # (B, E, Np) -> (B, E*Np): contiguous reshape (no transpose needed).
    h = h3.reshape(B, -1)
    h_masked = hm3.reshape(B, -1)
    return h_masked, h


# ---------------------------------------------------------------------------
# Deterministic parameter init (Conv2d(4, 32, kernel_size=4, stride=4))
# ---------------------------------------------------------------------------
def init_params(key):
    kw, kb = jax.random.split(key)
    # PyTorch weight layout (E, C, P, P); kernel consumes it flattened (E, K).
    w_conv = jax.random.normal(
        kw, (EMBED_DIM, IN_CH, PATCH, PATCH), jnp.float32) * 0.02
    b = jax.random.normal(kb, (EMBED_DIM,), jnp.float32) * 0.02
    return {
        "wT": w_conv.reshape(EMBED_DIM, KDIM),   # (E, K), k-order (c, p, q)
        "b": b.reshape(EMBED_DIM, 1),            # (E, 1)
    }


if __name__ == "__main__":
    key = jax.random.PRNGKey(0)
    k_param, k_x = jax.random.split(key)
    params = init_params(k_param)
    x = jax.random.normal(k_x, (BATCH, IN_CH, IMG, IMG), jnp.float32)

    forward = jax.jit(mae_encoder_forward,
                      static_argnames=("mask_ratio", "training"))

    # Eval path (no masking): h_masked == h
    h_masked_eval, h_eval = forward(x, params, mask_ratio=0.75, training=False)
    # Training path: random mask applied inside the fused kernel
    h_masked_train, h_train = forward(x, params, mask_ratio=0.75,
                                      training=True, seed=1234)
    jax.block_until_ready((h_masked_eval, h_eval, h_masked_train, h_train))

    # ---- checks -----------------------------------------------------------
    assert h_eval.shape == (BATCH, EMBED_DIM * NUM_PATCHES)

    # Backbone reference: plain lax conv (NCHW / OIHW), same params.
    w_conv = params["wT"].reshape(EMBED_DIM, IN_CH, PATCH, PATCH)
    ref = jax.lax.conv_general_dilated(
        x, w_conv, window_strides=(PATCH, PATCH), padding="VALID",
        dimension_numbers=("NCHW", "OIHW", "NCHW"))
    ref = ref + params["b"].reshape(1, EMBED_DIM, 1, 1)
    ref_h = ref.reshape(BATCH, -1)
    assert jnp.allclose(h_eval, ref_h, atol=5e-3, rtol=5e-3), "conv mismatch"
    assert jnp.allclose(h_masked_eval, h_eval), "eval path must not mask"
    assert jnp.allclose(h_train, h_eval, atol=5e-3, rtol=5e-3), \
        "h must be independent of masking"

    # Training: every element is either kept exactly or zeroed.
    zeroed = h_masked_train == 0.0
    kept = h_masked_train == h_train
    assert bool(jnp.all(zeroed | kept)), "mask must be exact 0/1"
    keep_frac = float(jnp.mean(kept.astype(jnp.float32)))
    assert 0.10 < keep_frac < 0.45, f"keep fraction {keep_frac} far from 0.25"

    print("KERNEL_OK")
</pallas_src>

<mosaic_0001>
module attributes {stable_mosaic.version = 11 : i64} {
  func.func @_mae_fused_kernel(%arg0: memref<1xi32, #tpu.memory_space<smem>>, %arg1: memref<2x64x16xf32, #tpu.memory_space<vmem>>, %arg2: memref<32x64xf32, #tpu.memory_space<vmem>>, %arg3: memref<32x1xf32, #tpu.memory_space<vmem>>, %arg4: memref<2x32x16xf32, #tpu.memory_space<vmem>>, %arg5: memref<2x32x16xf32, #tpu.memory_space<vmem>>) attributes {dimension_semantics = [], scalar_prefetch = 0 : i64, scratch_operands = 0 : i64, tpu.core_type = #tpu.core_type<tc>} {
    %c0 = arith.constant 0 : index
    %c0_0 = arith.constant 0 : index
    %0 = vector.load %arg2[%c0, %c0_0] : memref<32x64xf32, #tpu.memory_space<vmem>>, vector<32x64xf32>
    %c0_1 = arith.constant 0 : index
    %c0_2 = arith.constant 0 : index
    %1 = vector.load %arg3[%c0_1, %c0_2] : memref<32x1xf32, #tpu.memory_space<vmem>>, vector<32x1xf32>
    %c0_3 = arith.constant 0 : index
    %c0_4 = arith.constant 0 : index
    %c0_5 = arith.constant 0 : index
    %2 = vector.load %arg1[%c0_3, %c0_4, %c0_5] : memref<2x64x16xf32, #tpu.memory_space<vmem>>, vector<1x64x16xf32>
    %3 = vector.shape_cast %2 : vector<1x64x16xf32> to vector<64x16xf32>
    %cst = arith.constant dense<0.000000e+00> : vector<32x16xf32>
    %4 = tpu.matmul %0, %3, %cst {dimension_numbers = #tpu.dot_dimension_numbers<[1], [0], [0], [1], [0, 0, 1, 1], [], []>} : vector<32x64xf32>, vector<64x16xf32>, vector<32x16xf32> -> vector<32x16xf32>
    %5 = vector.broadcast %1 : vector<32x1xf32> to vector<32x16xf32>
    %6 = arith.addf %4, %5 : vector<32x16xf32>
    %c0_6 = arith.constant 0 : index
    %c0_7 = arith.constant 0 : index
    %c0_8 = arith.constant 0 : index
    %7 = vector.load %arg4[%c0_6, %c0_7, %c0_8] : memref<2x32x16xf32, #tpu.memory_space<vmem>>, vector<1x32x16xf32>
    %8 = vector.shape_cast %7 : vector<1x32x16xf32> to vector<32x16xf32>
    %9 = vector.shape_cast %6 : vector<32x16xf32> to vector<1x32x16xf32>
    tpu.vector_store %arg4[%c0_6, %c0_7, %c0_8], %9 {strides = array<i32>} : memref<2x32x16xf32, #tpu.memory_space<vmem>>, vector<1x32x16xf32>,
    %c0_9 = arith.constant 0 : index
    %c0_10 = arith.constant 0 : index
    %c0_11 = arith.constant 0 : index
    %10 = vector.load %arg5[%c0_9, %c0_10, %c0_11] : memref<2x32x16xf32, #tpu.memory_space<vmem>>, vector<1x32x16xf32>
    %11 = vector.shape_cast %10 : vector<1x32x16xf32> to vector<32x16xf32>
    %12 = vector.shape_cast %6 : vector<32x16xf32> to vector<1x32x16xf32>
    tpu.vector_store %arg5[%c0_9, %c0_10, %c0_11], %12 {strides = array<i32>} : memref<2x32x16xf32, #tpu.memory_space<vmem>>, vector<1x32x16xf32>,
    %c1 = arith.constant 1 : index
    %c0_12 = arith.constant 0 : index
    %c0_13 = arith.constant 0 : index
    %13 = vector.load %arg1[%c1, %c0_12, %c0_13] : memref<2x64x16xf32, #tpu.memory_space<vmem>>, vector<1x64x16xf32>
    %14 = vector.shape_cast %13 : vector<1x64x16xf32> to vector<64x16xf32>
    %cst_14 = arith.constant dense<0.000000e+00> : vector<32x16xf32>
    %15 = tpu.matmul %0, %14, %cst_14 {dimension_numbers = #tpu.dot_dimension_numbers<[1], [0], [0], [1], [0, 0, 1, 1], [], []>} : vector<32x64xf32>, vector<64x16xf32>, vector<32x16xf32> -> vector<32x16xf32>
    %16 = vector.broadcast %1 : vector<32x1xf32> to vector<32x16xf32>
    %17 = arith.addf %15, %16 : vector<32x16xf32>
    %c1_15 = arith.constant 1 : index
    %c0_16 = arith.constant 0 : index
    %c0_17 = arith.constant 0 : index
    %18 = vector.load %arg4[%c1_15, %c0_16, %c0_17] : memref<2x32x16xf32, #tpu.memory_space<vmem>>, vector<1x32x16xf32>
    %19 = vector.shape_cast %18 : vector<1x32x16xf32> to vector<32x16xf32>
    %20 = vector.shape_cast %17 : vector<32x16xf32> to vector<1x32x16xf32>
    tpu.vector_store %arg4[%c1_15, %c0_16, %c0_17], %20 {strides = array<i32>} : memref<2x32x16xf32, #tpu.memory_space<vmem>>, vector<1x32x16xf32>,
    %c1_18 = arith.constant 1 : index
    %c0_19 = arith.constant 0 : index
    %c0_20 = arith.constant 0 : index
    %21 = vector.load %arg5[%c1_18, %c0_19, %c0_20] : memref<2x32x16xf32, #tpu.memory_space<vmem>>, vector<1x32x16xf32>
    %22 = vector.shape_cast %21 : vector<1x32x16xf32> to vector<32x16xf32>
    %23 = vector.shape_cast %17 : vector<32x16xf32> to vector<1x32x16xf32>
    tpu.vector_store %arg5[%c1_18, %c0_19, %c0_20], %23 {strides = array<i32>} : memref<2x32x16xf32, #tpu.memory_space<vmem>>, vector<1x32x16xf32>,
    return
  }
}

</mosaic_0001>

<llo_original>
// kernel: mae_encoder_forward.1
$region0: #{mae_encoder_forward.1}
  #allocation0 [shape = 'u32[]', space=smem, size = 0x4, offset = 0x4, fixed_abs, tag = 'smem constant byte address 0x4 - core index']
  #allocation1 [shape = 'u32[144,128]{1,0:T(1,128)}', space=vmem, size = 0x12000, scoped, tag = 'internal scratch']
  #allocation2 [shape = 's32[1]{0:T(128)S(6)}', space=smem, size = 0x200, scoped, tag = 'scoped memory for mae_encoder_forward.1']
  %s0 = inlined_call_operand.<no memory space> [shape: s32[1], index: 0, kind: input, shape index: {}]
  %s1 = inlined_call_operand.vmem [shape: f32[2,64,16], index: 1, kind: input, shape index: {}]
  %s2 = inlined_call_operand.vmem [shape: f32[32,64], index: 2, kind: input, shape index: {}]
  %s3 = inlined_call_operand.vmem [shape: f32[32,1], index: 3, kind: input, shape index: {}]
  %s4 = inlined_call_operand.vmem [shape: f32[2,32,16], index: 4, kind: output, shape index: {0}]
  %s5 = inlined_call_operand.vmem [shape: f32[2,32,16], index: 5, kind: output, shape index: {1}]
  %6 = xla_tuple %s4, %s5
  %s7 = sld [smem:[#allocation0]]
  $region34: #{mae_encoder_forward.1} parent=0
    _
  %s9 = ssub.s32 1, %s7
  %s10 = scalar_select 0, %s9, %s7
  %11 = sst [smem:[#allocation2]] %s0
  // Predicated region
  $region2: #{mae_encoder_forward.1} parent=0 // pred_check
    _
  $region3: #{mae_encoder_forward.1} parent=0 // pred_check_branch
    %13 = sbr.rel (0) target = $region5
  $region4: #{mae_encoder_forward.1} parent=0 // pred_region
    _
  $region5: #{mae_encoder_forward.1} parent=0 // pred_fallthru
    _
  // Predicated region
  $region6: #{mae_encoder_forward.1} parent=0 // pred_check
    _
  $region7: #{mae_encoder_forward.1} parent=0 // pred_check_branch
    %15 = sbr.rel (0) target = $region9
  $region8: #{mae_encoder_forward.1} parent=0 // pred_region
    _
  $region9: #{mae_encoder_forward.1} parent=0 // pred_fallthru
    _
  // Predicated region
  $region10: #{mae_encoder_forward.1} parent=0 // pred_check
    _
  $region11: #{mae_encoder_forward.1} parent=0 // pred_check_branch
    %17 = sbr.rel (0) target = $region13
  $region12: #{mae_encoder_forward.1} parent=0 // pred_region
    _
  $region13: #{mae_encoder_forward.1} parent=0 // pred_fallthru
    _
  // Predicated region
  $region14: #{mae_encoder_forward.1} parent=0 // pred_check
    _
  $region15: #{mae_encoder_forward.1} parent=0 // pred_check_branch
    %19 = sbr.rel (0) target = $region17
  $region16: #{mae_encoder_forward.1} parent=0 // pred_region
    _
  $region17: #{mae_encoder_forward.1} parent=0 // pred_fallthru
    _
  %v20 = vld [vmem:[%s2] sm:$0xff]
  %v21 = vld [vmem:[%s2 + $0x8] sm:$0xff]
  %v22 = vld [vmem:[%s2 + $0x10] sm:$0xff]
  %v23 = vld [vmem:[%s2 + $0x18] sm:$0xff]
  %v24 = vld [vmem:[%s3] sm:$0xff]
  %v25 = vld [vmem:[%s3 + $0x8] sm:$0xff]
  %v26 = vld [vmem:[%s3 + $0x10] sm:$0xff]
  %v27 = vld [vmem:[%s3 + $0x18] sm:$0xff]
  %v28 = vld [vmem:[%s1] sm:$0xff]
  %v29 = vld [vmem:[%s1 + $0x8] sm:$0xff]
  %v30 = vld [vmem:[%s1 + $0x10] sm:$0xff]
  %v31 = vld [vmem:[%s1 + $0x18] sm:$0xff]
  %v32 = vld [vmem:[%s1 + $0x20] sm:$0xff]
  %v33 = vld [vmem:[%s1 + $0x28] sm:$0xff]
  %v34 = vld [vmem:[%s1 + $0x30] sm:$0xff]
  %v35 = vld [vmem:[%s1 + $0x38] sm:$0xff]
  %37 = vset.pattern.permute.xlu0 0
  %38 = vperm.xlu0 %37, %v24
  %v39 = vpop.permute.xlu0 %38
  %42 = vset.pattern.permute.xlu0 0
  %43 = vperm.xlu0 %42, %v25
  %v44 = vpop.permute.xlu0 %43
  %47 = vset.pattern.permute.xlu0 0
  %48 = vperm.xlu0 %47, %v26
  %v49 = vpop.permute.xlu0 %48
  %52 = vset.pattern.permute.xlu0 0
  %53 = vperm.xlu0 %52, %v27
  %v54 = vpop.permute.xlu0 %53
  %vm56 = vcmask 523264
  %v58 = vsel %vm56, %v20, 0
  %v61 = vsel %vm56, %v21, 0
  %v64 = vsel %vm56, %v22, 0
  %v67 = vsel %vm56, %v23, 0
  %69 = vmatprep.subr.mxu0 0.0
  %70 = vmatpush1.msra.mxu0 %v28
  %71 = vmatprep.subr.mxu0 0.0
  %72 = vmatpush1.msra.mxu0 %v29
  %73 = vmatprep.subr.mxu0 0.0
  %74 = vmatpush1.msra.mxu0 %v30
  %75 = vmatprep.subr.mxu0 0.0
  %76 = vmatpush1.msra.mxu0 %v31
  %77 = vmatprep.subr.mxu0 0.0
  %78 = vmatpush1.msra.mxu0 %v32
  %79 = vmatprep.subr.mxu0 0.0
  %80 = vmatpush1.msra.mxu0 %v33
  %81 = vmatprep.subr.mxu0 0.0
  %82 = vmatpush1.msra.mxu0 %v34
  %83 = vmatprep.subr.mxu0 0.0
  %84 = vmatpush1.msra.mxu0 %v35
  %85 = vmatprep.subr.mxu0 0.0
  %86 = vmatpush1.msra.mxu0 0.0
  %87 = vmatprep.subr.mxu0 0.0
  %88 = vmatpush1.msra.mxu0 0.0
  %89 = vmatprep.subr.mxu0 0.0
  %90 = vmatpush1.msra.mxu0 0.0
  %91 = vmatprep.subr.mxu0 0.0
  %92 = vmatpush1.msra.mxu0 0.0
  %93 = vmatprep.subr.mxu0 0.0
  %94 = vmatpush1.msra.mxu0 0.0
  %95 = vmatprep.subr.mxu0 0.0
  %96 = vmatpush1.msra.mxu0 0.0
  %97 = vmatprep.subr.mxu0 0.0
  %98 = vmatpush1.msra.mxu0 0.0
  %99 = vmatprep.subr.mxu0 0.0
  %100 = vmatpush1.msra.mxu0 0.0
  %101 = vmatprep.subr.mxu0 0.0
  %102 = vmatpush1.msra.mxu0 0.0
  %103 = vmatprep.subr.mxu0 0.0
  %104 = vmatpush1.msra.mxu0 0.0
  %105 = vmatprep.subr.mxu0 0.0
  %106 = vmatpush1.msra.mxu0 0.0
  %107 = vmatprep.subr.mxu0 0.0
  %108 = vmatpush1.msra.mxu0 0.0
  %109 = vmatprep.subr.mxu0 0.0
  %110 = vmatpush1.msra.mxu0 0.0
  %111 = vmatprep.subr.mxu0 0.0
  %112 = vmatpush1.msra.mxu0 0.0
  %113 = vmatprep.subr.mxu0 0.0
  %114 = vmatpush1.msra.mxu0 0.0
  %115 = vmatprep.subr.mxu0 0.0
  %116 = vmatpush1.msra.mxu0 0.0
  %117 = vmatprep.subr.mxu0 0.0
  %118 = vmatpush1.msra.mxu0 0.0
  %119 = vmatprep.subr.mxu0 0.0
  %120 = vmatpush1.msra.mxu0 0.0
  %121 = vmatprep.subr.mxu0 0.0
  %122 = vmatpush1.msra.mxu0 0.0
  %123 = vmatprep.subr.mxu0 0.0
  %124 = vmatpush1.msra.mxu0 0.0
  %125 = vmatprep.subr.mxu0 0.0
  %126 = vmatpush1.msra.mxu0 0.0
  %127 = vmatprep.subr.mxu0 0.0
  %128 = vmatpush1.msra.mxu0 0.0
  %129 = vmatprep.subr.mxu0 0.0
  %130 = vmatpush1.msra.mxu0 0.0
  %131 = vmatprep.subr.mxu0 0.0
  %132 = vmatpush1.msra.mxu0 0.0
  %133 = vmatprep.mubr.f32.mxu0 0.0
  %134 = vmatmul.mubr.f32.gmra.mrb[0].mxu0 %v58
  %v135 = vpop.f32.mrb[0].mxu0
  %v136 = vadd.f32 %v39, %v135
  %v137 = vpop.f32.mrb[0].mxu0
  %138 = vmatprep.mubr.f32.mxu0 0.0
  %139 = vmatmul.mubr.f32.gmra.mrb[0].mxu0 %v61
  %v140 = vpop.f32.mrb[0].mxu0
  %v141 = vadd.f32 %v44, %v140
  %v142 = vpop.f32.mrb[0].mxu0
  %143 = vmatprep.mubr.f32.mxu0 0.0
  %144 = vmatmul.mubr.f32.gmra.mrb[0].mxu0 %v64
  %v145 = vpop.f32.mrb[0].mxu0
  %v146 = vadd.f32 %v49, %v145
  %v147 = vpop.f32.mrb[0].mxu0
  %148 = vmatprep.mubr.f32.mxu0 0.0
  %149 = vmatmul.mubr.f32.gmra.mrb[0].mxu0 %v67
  %v150 = vpop.f32.mrb[0].mxu0
  %v151 = vadd.f32 %v54, %v150
  %v152 = vpop.f32.mrb[0].mxu0
  %153 = vdwg.mxu0
  %vm154 = vcmask 130048
  %155 = vst.msk [vmem:[%s4] sm:$0xff] %vm154, %v136
  %156 = vst.msk [vmem:[%s4 + $0x8] sm:$0xff] %vm154, %v141
  %157 = vst.msk [vmem:[%s4 + $0x10] sm:$0xff] %vm154, %v146
  %158 = vst.msk [vmem:[%s4 + $0x18] sm:$0xff] %vm154, %v151
  %159 = vst.msk [vmem:[%s5] sm:$0xff] %vm154, %v136
  %160 = vst.msk [vmem:[%s5 + $0x8] sm:$0xff] %vm154, %v141
  %161 = vst.msk [vmem:[%s5 + $0x10] sm:$0xff] %vm154, %v146
  %162 = vst.msk [vmem:[%s5 + $0x18] sm:$0xff] %vm154, %v151
  %s163 = scalar_lea.vmem %s1, 64
  %v164 = vld [vmem:[%s163] sm:$0xff]
  %v165 = vld [vmem:[%s163 + $0x8] sm:$0xff]
  %v166 = vld [vmem:[%s163 + $0x10] sm:$0xff]
  %v167 = vld [vmem:[%s163 + $0x18] sm:$0xff]
  %v168 = vld [vmem:[%s163 + $0x20] sm:$0xff]
  %v169 = vld [vmem:[%s163 + $0x28] sm:$0xff]
  %v170 = vld [vmem:[%s163 + $0x30] sm:$0xff]
  %v171 = vld [vmem:[%s163 + $0x38] sm:$0xff]
  %172 = vmatprep.subr.mxu0 0.0
  %173 = vmatpush1.msra.mxu0 %v164
  %174 = vmatprep.subr.mxu0 0.0
  %175 = vmatpush1.msra.mxu0 %v165
  %176 = vmatprep.subr.mxu0 0.0
  %177 = vmatpush1.msra.mxu0 %v166
  %178 = vmatprep.subr.mxu0 0.0
  %179 = vmatpush1.msra.mxu0 %v167
  %180 = vmatprep.subr.mxu0 0.0
  %181 = vmatpush1.msra.mxu0 %v168
  %182 = vmatprep.subr.mxu0 0.0
  %183 = vmatpush1.msra.mxu0 %v169
  %184 = vmatprep.subr.mxu0 0.0
  %185 = vmatpush1.msra.mxu0 %v170
  %186 = vmatprep.subr.mxu0 0.0
  %187 = vmatpush1.msra.mxu0 %v171
  %188 = vmatprep.subr.mxu0 0.0
  %189 = vmatpush1.msra.mxu0 0.0
  %190 = vmatprep.subr.mxu0 0.0
  %191 = vmatpush1.msra.mxu0 0.0
  %192 = vmatprep.subr.mxu0 0.0
  %193 = vmatpush1.msra.mxu0 0.0
  %194 = vmatprep.subr.mxu0 0.0
  %195 = vmatpush1.msra.mxu0 0.0
  %196 = vmatprep.subr.mxu0 0.0
  %197 = vmatpush1.msra.mxu0 0.0
  %198 = vmatprep.subr.mxu0 0.0
  %199 = vmatpush1.msra.mxu0 0.0
  %200 = vmatprep.subr.mxu0 0.0
  %201 = vmatpush1.msra.mxu0 0.0
  %202 = vmatprep.subr.mxu0 0.0
  %203 = vmatpush1.msra.mxu0 0.0
  %204 = vmatprep.subr.mxu0 0.0
  %205 = vmatpush1.msra.mxu0 0.0
  %206 = vmatprep.subr.mxu0 0.0
  %207 = vmatpush1.msra.mxu0 0.0
  %208 = vmatprep.subr.mxu0 0.0
  %209 = vmatpush1.msra.mxu0 0.0
  %210 = vmatprep.subr.mxu0 0.0
  %211 = vmatpush1.msra.mxu0 0.0
  %212 = vmatprep.subr.mxu0 0.0
  %213 = vmatpush1.msra.mxu0 0.0
  %214 = vmatprep.subr.mxu0 0.0
  %215 = vmatpush1.msra.mxu0 0.0
  %216 = vmatprep.subr.mxu0 0.0
  %217 = vmatpush1.msra.mxu0 0.0
  %218 = vmatprep.subr.mxu0 0.0
  %219 = vmatpush1.msra.mxu0 0.0
  %220 = vmatprep.subr.mxu0 0.0
  %221 = vmatpush1.msra.mxu0 0.0
  %222 = vmatprep.subr.mxu0 0.0
  %223 = vmatpush1.msra.mxu0 0.0
  %224 = vmatprep.subr.mxu0 0.0
  %225 = vmatpush1.msra.mxu0 0.0
  %226 = vmatprep.subr.mxu0 0.0
  %227 = vmatpush1.msra.mxu0 0.0
  %228 = vmatprep.subr.mxu0 0.0
  %229 = vmatpush1.msra.mxu0 0.0
  %230 = vmatprep.subr.mxu0 0.0
  %231 = vmatpush1.msra.mxu0 0.0
  %232 = vmatprep.subr.mxu0 0.0
  %233 = vmatpush1.msra.mxu0 0.0
  %234 = vmatprep.subr.mxu0 0.0
  %235 = vmatpush1.msra.mxu0 0.0
  %236 = vmatprep.mubr.f32.mxu0 0.0
  %237 = vmatmul.mubr.f32.gmra.mrb[0].mxu0 %v58
  %v238 = vpop.f32.mrb[0].mxu0
  %v239 = vadd.f32 %v39, %v238
  %v240 = vpop.f32.mrb[0].mxu0
  %241 = vmatprep.mubr.f32.mxu0 0.0
  %242 = vmatmul.mubr.f32.gmra.mrb[0].mxu0 %v61
  %v243 = vpop.f32.mrb[0].mxu0
  %v244 = vadd.f32 %v44, %v243
  %v245 = vpop.f32.mrb[0].mxu0
  %246 = vmatprep.mubr.f32.mxu0 0.0
  %247 = vmatmul.mubr.f32.gmra.mrb[0].mxu0 %v64
  %v248 = vpop.f32.mrb[0].mxu0
  %v249 = vadd.f32 %v49, %v248
  %v250 = vpop.f32.mrb[0].mxu0
  %251 = vmatprep.mubr.f32.mxu0 0.0
  %252 = vmatmul.mubr.f32.gmra.mrb[0].mxu0 %v67
  %v253 = vpop.f32.mrb[0].mxu0
  %v254 = vadd.f32 %v54, %v253
  %v255 = vpop.f32.mrb[0].mxu0
  %256 = vdwg.mxu0
  %s257 = scalar_lea.vmem %s4, 32
  %258 = vst.msk [vmem:[%s257] sm:$0xff] %vm154, %v239
  %259 = vst.msk [vmem:[%s257 + $0x8] sm:$0xff] %vm154, %v244
  %260 = vst.msk [vmem:[%s257 + $0x10] sm:$0xff] %vm154, %v249
  %261 = vst.msk [vmem:[%s257 + $0x18] sm:$0xff] %vm154, %v254
  %s262 = scalar_lea.vmem %s5, 32
  %263 = vst.msk [vmem:[%s262] sm:$0xff] %vm154, %v239
  %264 = vst.msk [vmem:[%s262 + $0x8] sm:$0xff] %vm154, %v244
  %265 = vst.msk [vmem:[%s262 + $0x10] sm:$0xff] %vm154, %v249
  %266 = vst.msk [vmem:[%s262 + $0x18] sm:$0xff] %vm154, %v254
  // Predicated region
  $region18: #{mae_encoder_forward.1} parent=0 // pred_check
    _
  $region19: #{mae_encoder_forward.1} parent=0 // pred_check_branch
    %268 = sbr.rel (0) target = $region21
  $region20: #{mae_encoder_forward.1} parent=0 // pred_region
    _
  $region21: #{mae_encoder_forward.1} parent=0 // pred_fallthru
    _
  // Predicated region
  $region22: #{mae_encoder_forward.1} parent=0 // pred_check
    _
  $region23: #{mae_encoder_forward.1} parent=0 // pred_check_branch
    %270 = sbr.rel (0) target = $region25
  $region24: #{mae_encoder_forward.1} parent=0 // pred_region
    _
  $region25: #{mae_encoder_forward.1} parent=0 // pred_fallthru
    _
  // Predicated region
  $region26: #{mae_encoder_forward.1} parent=0 // pred_check
    _
  $region27: #{mae_encoder_forward.1} parent=0 // pred_check_branch
    %272 = sbr.rel (0) target = $region29
  $region28: #{mae_encoder_forward.1} parent=0 // pred_region
    _
  $region29: #{mae_encoder_forward.1} parent=0 // pred_fallthru
    _
  // Predicated region
  $region30: #{mae_encoder_forward.1} parent=0 // pred_check
    _
  $region31: #{mae_encoder_forward.1} parent=0 // pred_check_branch
    %274 = sbr.rel (0) target = $region33
  $region32: #{mae_encoder_forward.1} parent=0 // pred_region
    _
  $region33: #{mae_encoder_forward.1} parent=0 // pred_fallthru
    _

</llo_original>
